<compile_context>
chip_gen: v5e
topology: v5e:2x2
jax: 0.10.0
libtpu: 0.0.40
codegen_flags: <defaults>
</compile_context>

<pallas_src>
import jax
import jax.numpy as jnp
from jax.experimental import pallas as pl
from jax.experimental.pallas import tpu as pltpu


def _round_up(x, m):
    return ((x + m - 1) // m) * m


def _planar_flow_kernel(scal_ref, w_ref, u_ref, x_ref, z_ref, ld_ref):
    # scal_ref: SMEM (2,) f32   -> [b, u_hat @ w]
    # w_ref   : VMEM (1, Dp)
    # u_ref   : VMEM (1, Dp)    (already the reparameterized u_hat)
    # x_ref   : VMEM (TILE_N, Dp)
    # z_ref   : VMEM (TILE_N, Dp)
    # ld_ref  : VMEM (TILE_N, 1)
    b = scal_ref[0]
    uw = scal_ref[1]

    x = x_ref[...]                          # (TILE_N, Dp)
    w = w_ref[...]                          # (1, Dp), broadcasts over rows
    u = u_ref[...]                          # (1, Dp)

    wx = jnp.sum(w * x, axis=-1, keepdims=True) + b                # (TILE_N, 1)
    zwx = jnp.tanh(wx)                                             # (TILE_N, 1)

    z_ref[...] = x + u * zwx                                       # (TILE_N, Dp)
    ld_ref[...] = jnp.log(jnp.abs(1.0 + uw * (1.0 - zwx * zwx)))   # (TILE_N, 1)


def planar_flow(x, w, b, u, *, tile_n=1024):
    """x: [N, D] float32.  w, u: [D].  b: [1]. Returns (z [N,D], log_det [N,1])."""
    x = x.astype(jnp.float32)
    w = w.astype(jnp.float32)
    u = u.astype(jnp.float32)
    b = jnp.asarray(b, jnp.float32).reshape(-1)

    N, D = x.shape

    # ---- parameter reparameterization (cheap O(D) glue, plain JAX) ----
    wu = jnp.dot(w, u)                                               # scalar w @ u
    u_hat = u + (-1.0 + jax.nn.softplus(wu) + wu) * w / jnp.sum(w * w)
    uw = jnp.dot(u_hat, w)                                           # scalar u_hat @ w
    scalars = jnp.stack([b[0], uw]).astype(jnp.float32)              # (2,) -> SMEM

    # ---- lane-dense feature padding + batch tiling ----
    d_pad = _round_up(max(D, 128), 128)

    # Keep double-buffered x+z f32 tiles well inside the default scoped VMEM
    # limit on all generations (16 MiB v5e, 32 MiB v6e/v7x):
    #   2 arrays * 2 buffers * tile_n * d_pad * 4 B  <=  ~12 MiB
    vmem_budget = 12 * 1024 * 1024
    max_tile = max(8, (vmem_budget // (16 * d_pad)) // 8 * 8)
    tile_n = min(tile_n, max_tile)
    tile_n = min(tile_n, _round_up(N, 8))      # don't over-tile tiny batches
    n_pad = _round_up(N, tile_n)

    # Zero padding is semantically inert; padded rows/cols are sliced off below.
    x_p = jnp.pad(x, ((0, n_pad - N), (0, d_pad - D)))
    w_p = jnp.pad(w, (0, d_pad - D)).reshape(1, d_pad)
    u_p = jnp.pad(u_hat, (0, d_pad - D)).reshape(1, d_pad)

    grid = (n_pad // tile_n,)

    z_p, ld_p = pl.pallas_call(
        _planar_flow_kernel,
        out_shape=(
            jax.ShapeDtypeStruct((n_pad, d_pad), jnp.float32),
            jax.ShapeDtypeStruct((n_pad, 1), jnp.float32),
        ),
        grid=grid,
        in_specs=[
            pl.BlockSpec(memory_space=pltpu.MemorySpace.SMEM),       # scalars
            pl.BlockSpec((1, d_pad), lambda i: (0, 0)),              # w (resident)
            pl.BlockSpec((1, d_pad), lambda i: (0, 0)),              # u_hat (resident)
            pl.BlockSpec((tile_n, d_pad), lambda i: (i, 0)),         # x (streamed)
        ],
        out_specs=(
            pl.BlockSpec((tile_n, d_pad), lambda i: (i, 0)),         # z (streamed)
            pl.BlockSpec((tile_n, 1), lambda i: (i, 0)),             # log_det
        ),
        compiler_params=pltpu.CompilerParams(
            # Batch axis is embarrassingly parallel -> shard across TensorCores
            # (near-2x on v7x megacore), pipelined DMA on all generations.
            dimension_semantics=("parallel",),
        ),
    )(scalars, w_p, u_p, x_p)

    return z_p[:N, :D], ld_p[:N, :]


def planar_flow_ref(x, w, b, u):
    """Pure-JAX reference matching the PyTorch module."""
    wx = jnp.sum(w * x, axis=-1, keepdims=True) + b
    zwx = jnp.tanh(wx)
    wu = jnp.dot(w, u)
    u_hat = u + (-1.0 + jax.nn.softplus(wu) + wu) * w / jnp.sum(w ** 2)
    z = x + u_hat * zwx
    log_det = jnp.log(jnp.abs(1.0 + jnp.dot(u_hat, w) * (1.0 - zwx ** 2)))
    return z, log_det


if __name__ == "__main__":
    key = jax.random.PRNGKey(0)

    # Two cases: a tiny single-tile one and one that exercises feature padding
    # (200 -> 256) plus a multi-tile grid (tile_n=128 over 264 padded rows).
    for (N, D, tn) in [(8, 32, 1024), (264, 200, 128)]:
        k_w, k_b, k_u, k_x = jax.random.split(jax.random.fold_in(key, N), 4)
        # Well-conditioned test parameters:
        #  * scale w, u by 1/sqrt(D) so w@x and w@u are O(1),
        #  * flip u's sign so w@u >= 0, which guarantees u_hat@w >= log(2)-1
        #    and hence |1 + (u_hat@w)*(1 - tanh^2)| >= ~0.69 for every row --
        #    keeps log_det far from its singularity where fp noise is amplified.
        w = jax.random.normal(k_w, (D,), dtype=jnp.float32) / jnp.sqrt(jnp.float32(D))
        u = jax.random.normal(k_u, (D,), dtype=jnp.float32) / jnp.sqrt(jnp.float32(D))
        u = jnp.where(jnp.dot(w, u) < 0.0, -u, u)
        b = jax.random.normal(k_b, (1,), dtype=jnp.float32)
        x = jax.random.normal(k_x, (N, D), dtype=jnp.float32)

        z, log_det = planar_flow(x, w, b, u, tile_n=tn)
        jax.block_until_ready((z, log_det))

        z_ref, ld_ref = planar_flow_ref(x, w, b, u)
        assert z.shape == (N, D) and log_det.shape == (N, 1)
        assert jnp.allclose(z, z_ref, atol=1e-5, rtol=1e-5)
        # log() amplifies tiny fp differences in wx; 1e-4 is tight given the
        # conditioning enforced above (argument >= ~0.69).
        assert jnp.allclose(log_det, ld_ref, atol=1e-4, rtol=1e-4)

    print("KERNEL_OK")
</pallas_src>

<mosaic_0001>
module attributes {stable_mosaic.version = 11 : i64} {
  func.func @_planar_flow_kernel(%arg0: i32, %arg1: memref<2xf32, #tpu.memory_space<smem>>, %arg2: memref<1x128xf32, #tpu.memory_space<vmem>>, %arg3: memref<1x128xf32, #tpu.memory_space<vmem>>, %arg4: memref<8x128xf32, #tpu.memory_space<vmem>>, %arg5: memref<8x128xf32, #tpu.memory_space<vmem>>, %arg6: memref<8x1xf32, #tpu.memory_space<vmem>>) attributes {dimension_semantics = [#tpu.dimension_semantics<parallel>], iteration_bounds = array<i64: 1>, scalar_prefetch = 0 : i64, scratch_operands = 0 : i64, tpu.core_type = #tpu.core_type<tc>, window_params = [{transform_indices = @transform_0, window_bounds = array<i64: 2>}, {pipeline_mode = #tpu.pipeline_mode<synchronous>, transform_indices = @transform_1, window_bounds = array<i64: 1, 128>}, {pipeline_mode = #tpu.pipeline_mode<synchronous>, transform_indices = @transform_2, window_bounds = array<i64: 1, 128>}, {transform_indices = @transform_3, window_bounds = array<i64: 8, 128>}, {transform_indices = @transform_4, window_bounds = array<i64: 8, 128>}, {transform_indices = @transform_5, window_bounds = array<i64: 8, 1>}]} {
    %c0 = arith.constant 0 : index
    %0 = memref.load %arg1[%c0] : memref<2xf32, #tpu.memory_space<smem>>
    %c1 = arith.constant 1 : index
    %1 = memref.load %arg1[%c1] : memref<2xf32, #tpu.memory_space<smem>>
    %c0_0 = arith.constant 0 : index
    %c0_1 = arith.constant 0 : index
    %2 = vector.load %arg4[%c0_0, %c0_1] : memref<8x128xf32, #tpu.memory_space<vmem>>, vector<8x128xf32>
    %c0_2 = arith.constant 0 : index
    %c0_3 = arith.constant 0 : index
    %3 = vector.load %arg2[%c0_2, %c0_3] : memref<1x128xf32, #tpu.memory_space<vmem>>, vector<1x128xf32>
    %c0_4 = arith.constant 0 : index
    %c0_5 = arith.constant 0 : index
    %4 = vector.load %arg3[%c0_4, %c0_5] : memref<1x128xf32, #tpu.memory_space<vmem>>, vector<1x128xf32>
    %5 = vector.broadcast %3 : vector<1x128xf32> to vector<8x128xf32>
    %6 = arith.mulf %5, %2 : vector<8x128xf32>
    %cst = arith.constant dense<0.000000e+00> : vector<8xf32>
    %7 = vector.multi_reduction <add>, %6, %cst [1] : vector<8x128xf32> to vector<8xf32>
    %8 = vector.shape_cast %7 : vector<8xf32> to vector<8x1xf32>
    %9 = vector.broadcast %0 : f32 to vector<8x1xf32>
    %10 = arith.addf %8, %9 : vector<8x1xf32>
    %11 = math.tanh %10 : vector<8x1xf32>
    %12 = vector.broadcast %4 : vector<1x128xf32> to vector<8x128xf32>
    %13 = vector.broadcast %11 : vector<8x1xf32> to vector<8x128xf32>
    %14 = arith.mulf %12, %13 : vector<8x128xf32>
    %15 = arith.addf %2, %14 : vector<8x128xf32>
    %c0_6 = arith.constant 0 : index
    %c0_7 = arith.constant 0 : index
    %16 = vector.load %arg5[%c0_6, %c0_7] : memref<8x128xf32, #tpu.memory_space<vmem>>, vector<8x128xf32>
    tpu.vector_store %arg5[%c0_6, %c0_7], %15 {strides = array<i32>} : memref<8x128xf32, #tpu.memory_space<vmem>>, vector<8x128xf32>,
    %17 = arith.mulf %11, %11 : vector<8x1xf32>
    %cst_8 = arith.constant 1.000000e+00 : f32
    %18 = vector.broadcast %cst_8 : f32 to vector<8x1xf32>
    %19 = arith.subf %18, %17 : vector<8x1xf32>
    %20 = vector.broadcast %1 : f32 to vector<8x1xf32>
    %21 = arith.mulf %20, %19 : vector<8x1xf32>
    %cst_9 = arith.constant 1.000000e+00 : f32
    %22 = vector.broadcast %cst_9 : f32 to vector<8x1xf32>
    %23 = arith.addf %22, %21 : vector<8x1xf32>
    %24 = math.absf %23 : vector<8x1xf32>
    %25 = math.log %24 : vector<8x1xf32>
    %c0_10 = arith.constant 0 : index
    %c0_11 = arith.constant 0 : index
    %26 = vector.load %arg6[%c0_10, %c0_11] : memref<8x1xf32, #tpu.memory_space<vmem>>, vector<8x1xf32>
    tpu.vector_store %arg6[%c0_10, %c0_11], %25 {strides = array<i32>} : memref<8x1xf32, #tpu.memory_space<vmem>>, vector<8x1xf32>,
    return
  }
  func.func @transform_0(%arg0: i32) -> i32 {
    %c0_i32 = arith.constant 0 : i32
    %c0_i32_0 = arith.constant 0 : i32
    return %c0_i32 : i32
  }
  func.func @transform_1(%arg0: i32) -> (i32, i32) {
    %c0_i32 = arith.constant 0 : i32
    %c0_i32_0 = arith.constant 0 : i32
    %c0_i32_1 = arith.constant 0 : i32
    return %c0_i32, %c0_i32_0 : i32, i32
  }
  func.func @transform_2(%arg0: i32) -> (i32, i32) {
    %c0_i32 = arith.constant 0 : i32
    %c0_i32_0 = arith.constant 0 : i32
    %c0_i32_1 = arith.constant 0 : i32
    return %c0_i32, %c0_i32_0 : i32, i32
  }
  func.func @transform_3(%arg0: i32) -> (i32, i32) {
    %c0_i32 = arith.constant 0 : i32
    %c0_i32_0 = arith.constant 0 : i32
    return %arg0, %c0_i32 : i32, i32
  }
  func.func @transform_4(%arg0: i32) -> (i32, i32) {
    %c0_i32 = arith.constant 0 : i32
    %c0_i32_0 = arith.constant 0 : i32
    return %arg0, %c0_i32 : i32, i32
  }
  func.func @transform_5(%arg0: i32) -> (i32, i32) {
    %c0_i32 = arith.constant 0 : i32
    %c0_i32_0 = arith.constant 0 : i32
    return %arg0, %c0_i32 : i32, i32
  }
}

</mosaic_0001>

<llo_original>
// kernel: tpu_custom_call.1
$region0: #{tpu_custom_call.1}
  #allocation0 [shape = 'u32[]', space=smem, size = 0x4, offset = 0x4, fixed_abs, tag = 'smem constant byte address 0x4 - core index']
  #allocation1 [shape = 'u32[72,128]{1,0:T(1,128)}', space=vmem, size = 0x9000, scoped, tag = 'internal scratch']
  %s0 = inlined_call_operand.hbm [shape: f32[2], index: 0, kind: input, shape index: {}]
  %s1 = inlined_call_operand.hbm [shape: f32[1,128], index: 1, kind: input, shape index: {}]
  %s2 = inlined_call_operand.vmem [shape: f32[1,128], index: 2, kind: input, shape index: {}]
  %s3 = inlined_call_operand.hbm [shape: f32[8,128], index: 3, kind: input, shape index: {}]
  %s4 = inlined_call_operand.hbm [shape: f32[8,128], index: 4, kind: output, shape index: {0}]
  %s5 = inlined_call_operand.vmem [shape: f32[8,1], index: 5, kind: output, shape index: {1}]
  %6 = xla_tuple %s4, %s5
  %s7 = sld [smem:[#allocation0]]
  $region46: #{tpu_custom_call.1} parent=0
    _
  %s9 = ssub.s32 1, %s7
  %s10 = scalar_select 0, %s9, %s7
  $region1: #{tpu_custom_call.1} parent=0
    #allocation2 [shape = 'u8[512]{0}', space=smem, size = 0x200, scoped, tag = 'input window, operand 0, single buffered']
    #allocation3 [shape = 's32[1]{0}', space=sflag, size = 0x4, scoped, tag = 'scoped memory for tpu_custom_call.1']
    #allocation4 [shape = 's32[1]{0}', space=sflag, size = 0x4, scoped, tag = 'scoped memory for tpu_custom_call.1']
    #allocation5 [shape = 's32[1]{0}', space=sflag, size = 0x4, scoped, tag = 'scoped memory for tpu_custom_call.1']
    #allocation6 [shape = 'u8[512]{0}', space=vmem, size = 0x400, scoped, tag = 'input window, operand 1, single buffered']
    #allocation7 [shape = 'u8[4096]{0}', space=vmem, size = 0x1000, scoped, tag = 'input window, operand 3, single buffered']
    #allocation8 [shape = 's32[1]{0}', space=sflag, size = 0x4, scoped, tag = 'scoped memory for tpu_custom_call.1']
    #allocation9 [shape = 'u8[4096]{0}', space=vmem, size = 0x1000, scoped, tag = 'output window, operand 0, single buffered']
    %11 = vsyncpa [#allocation5], 0
    %12 = vsyncpa [#allocation3], 0
    %13 = vsyncpa [#allocation8], 0
    %14 = vsyncpa [#allocation4], 0
    // Predicated region
    $region2: #{tpu_custom_call.1} parent=1 // pred_check
      _
    $region3: #{tpu_custom_call.1} parent=1 // pred_check_branch
      %16 = sbr.rel (0) target = $region5
    $region4: #{tpu_custom_call.1} parent=1 // pred_region
      %18 = vsyncadd [#allocation5], 0
      %s20 = sshll.u32 %s0, 4
      %s21 = int_to_ptr.hbm [resolvable:$true] %s20
      %23 = dma.hbm_to_smem %s21, 16, [#allocation2], [#allocation5]
    $region5: #{tpu_custom_call.1} parent=1 // pred_fallthru
      _
    // Predicated region
    $region6: #{tpu_custom_call.1} parent=1 // pred_check
      _
    $region7: #{tpu_custom_call.1} parent=1 // pred_check_branch
      %25 = sbr.rel (0) target = $region9
    $region8: #{tpu_custom_call.1} parent=1 // pred_region
      %27 = vsyncadd [#allocation3], 0
      %s29 = sshll.u32 %s1, 4
      %s30 = int_to_ptr.hbm [resolvable:$true] %s29
      %s31 = sshll.u32 [#allocation6], 4
      %s32 = int_to_ptr.vmem [resolvable:$true] %s31
      %34 = dma.hbm_to_vmem [thread:$0]  %s30, 16, %s32, [#allocation3]
    $region9: #{tpu_custom_call.1} parent=1 // pred_fallthru
      _
    // Predicated region
    $region10: #{tpu_custom_call.1} parent=1 // pred_check
      _
    $region11: #{tpu_custom_call.1} parent=1 // pred_check_branch
      %36 = sbr.rel (0) target = $region13
    $region12: #{tpu_custom_call.1} parent=1 // pred_region
      _
    $region13: #{tpu_custom_call.1} parent=1 // pred_fallthru
      _
    // Predicated region
    $region14: #{tpu_custom_call.1} parent=1 // pred_check
      _
    $region15: #{tpu_custom_call.1} parent=1 // pred_check_branch
      %38 = sbr.rel (0) target = $region17
    $region16: #{tpu_custom_call.1} parent=1 // pred_region
      %40 = vsyncadd [#allocation8], 0
      %s42 = sshll.u32 %s3, 4
      %s43 = int_to_ptr.hbm [resolvable:$true] %s42
      %s44 = sshll.u32 [#allocation7], 4
      %s45 = int_to_ptr.vmem [resolvable:$true] %s44
      %47 = dma.hbm_to_vmem [thread:$0]  %s43, 128, %s45, [#allocation8]
    $region17: #{tpu_custom_call.1} parent=1 // pred_fallthru
      _
    // Predicated region
    $region18: #{tpu_custom_call.1} parent=1 // pred_check
      _
    $region19: #{tpu_custom_call.1} parent=1 // pred_check_branch
      %49 = sbr.rel (0) target = $region21
    $region20: #{tpu_custom_call.1} parent=1 // pred_region
      %51 = dma.done [#allocation5], 16
    $region21: #{tpu_custom_call.1} parent=1 // pred_fallthru
      _
    // Predicated region
    $region22: #{tpu_custom_call.1} parent=1 // pred_check
      _
    $region23: #{tpu_custom_call.1} parent=1 // pred_check_branch
      %53 = sbr.rel (0) target = $region25
    $region24: #{tpu_custom_call.1} parent=1 // pred_region
      %55 = dma.done [#allocation3], 16
    $region25: #{tpu_custom_call.1} parent=1 // pred_fallthru
      _
    // Predicated region
    $region26: #{tpu_custom_call.1} parent=1 // pred_check
      _
    $region27: #{tpu_custom_call.1} parent=1 // pred_check_branch
      %57 = sbr.rel (0) target = $region29
    $region28: #{tpu_custom_call.1} parent=1 // pred_region
      %59 = dma.done [#allocation8], 128
    $region29: #{tpu_custom_call.1} parent=1 // pred_fallthru
      _
    %60 = sfence
    %s61 = sld [smem:[#allocation2]]
    %s62 = sld [smem:[#allocation2 + $0x1]]
    %v63 = vld [vmem:[#allocation7] sm:$0xff]
    %v64 = vld [vmem:[#allocation6] sm:$0x1]
    %v65 = vld [vmem:[%s2] sm:$0x1]
    %v67 = vperm.slane %v64, 0
    %v69 = vmul.f32 %v67, %v63
    %70 = vadd.xlane.f32.xlu0 %v69
    %v71 = vpop.xlane.xlu0 %70
    %v72 = vstv %s61
    %v73 = vadd.f32 %v71, %v72
    %v74 = vtanh.pop %v73
    %v76 = vperm.slane %v65, 0
    %v78 = vmul.f32 %v76, %v74
    %v79 = vadd.f32 %v63, %v78
    %80 = vst [vmem:[#allocation9] sm:$0xff] %v79
    %v81 = vmul.f32 %v74, %v74
    %v82 = vsub.f32 1.0, %v81
    %v83 = vstv %s62
    %v84 = vmul.f32 %v83, %v82
    %v85 = vadd.f32 %v84, 1.0
    %v86 = vand.u32 2147483647, %v85
    %v87 = vlog2.pop %v86
    %v88 = vmul.f32 %v87, 0.6931472
    %vm89 = vcmask 7168
    %90 = vst.msk [vmem:[%s5] sm:$0xff] %vm89, %v88
    // Predicated region
    $region30: #{tpu_custom_call.1} parent=1 // pred_check
      _
    $region31: #{tpu_custom_call.1} parent=1 // pred_check_branch
      %92 = sbr.rel (0) target = $region33
    $region32: #{tpu_custom_call.1} parent=1 // pred_region
      %94 = vsyncadd [#allocation4], 0
      %s96 = sshll.u32 [#allocation9], 4
      %s97 = int_to_ptr.vmem [resolvable:$true] %s96
      %s98 = sshll.u32 %s4, 4
      %s99 = int_to_ptr.hbm [resolvable:$true] %s98
      %101 = dma.vmem_to_hbm [thread:$0]  %s97, 128, %s99, [#allocation4]
    $region33: #{tpu_custom_call.1} parent=1 // pred_fallthru
      _
    // Predicated region
    $region34: #{tpu_custom_call.1} parent=1 // pred_check
      _
    $region35: #{tpu_custom_call.1} parent=1 // pred_check_branch
      %103 = sbr.rel (0) target = $region37
    $region36: #{tpu_custom_call.1} parent=1 // pred_region
      _
    $region37: #{tpu_custom_call.1} parent=1 // pred_fallthru
      _
    // Predicated region
    $region38: #{tpu_custom_call.1} parent=1 // pred_check
      _
    $region39: #{tpu_custom_call.1} parent=1 // pred_check_branch
      %105 = sbr.rel (0) target = $region41
    $region40: #{tpu_custom_call.1} parent=1 // pred_region
      %107 = dma.done [#allocation4], 128
    $region41: #{tpu_custom_call.1} parent=1 // pred_fallthru
      _
    // Predicated region
    $region42: #{tpu_custom_call.1} parent=1 // pred_check
      _
    $region43: #{tpu_custom_call.1} parent=1 // pred_check_branch
      %109 = sbr.rel (0) target = $region45
    $region44: #{tpu_custom_call.1} parent=1 // pred_region
      _
    $region45: #{tpu_custom_call.1} parent=1 // pred_fallthru
      _
    %110 = vsyncpa [#allocation3], 1
    %111 = vsyncpa [#allocation8], 1
    %112 = vsyncpa [#allocation4], 1
    %113 = vsyncpa [#allocation5], 1

</llo_original>
